<compile_context>
chip_gen: v7x
topology: tpu7x:2x2x1
jax: 0.10.0
libtpu: 0.0.40
codegen_flags: <defaults>
</compile_context>

<pallas_src>
import jax
import jax.numpy as jnp
from jax.experimental import pallas as pl
from jax.experimental.pallas import tpu as pltpu


# ----------------------------------------------------------------------------
# Fused kernel factory (static dims / slab offsets baked in via closure)
# ----------------------------------------------------------------------------
def _make_model2_kernel(dims, offs):
    input_dim = dims["input_dim"]
    H = dims["hidden_dim"]
    P = dims["protein_dim"]
    D1 = dims["dim_p1"]           # 256
    D2 = dims["dim_p2"]           # 64
    F1 = dims["fc1_out"]          # 128
    F2 = dims["fc2_out"]          # 64
    F3 = dims["fc3_out"]          # 32

    def kernel(a_ref, x_ref, pool_ref, prot_ref,
               wconv_ref, wmid_ref, wtail_ref, small_ref,
               o_ref, zcat_ref):
        f32, bf16 = jnp.float32, jnp.bfloat16

        def seg(name):
            off, n = offs[name]                     # static python ints (128-aligned start)
            return small_ref[:, off:off + n]        # [1, n] f32

        # A_norm stays resident in VMEM / vregs and feeds BOTH GCN layers.
        a = a_ref[...]                              # [N, N] bf16

        # Static views into the packed bf16 weight slabs (row offsets are
        # multiples of 16 at these dims -> clean bf16 sublane tiling).
        w_conv1 = wconv_ref[0:input_dim, :]                      # [input_dim, H]
        w_conv2 = wconv_ref[input_dim:input_dim + H, :]          # [H, H]
        w_pfc1 = wmid_ref[0:P, :]                                # [P, D1]
        w_fc1 = wmid_ref[P:P + H + D2, 0:F1]                     # [H+64, 128]
        w_pfc2 = wtail_ref[0:D1, :]                              # [D1, D2]
        w_fc2 = wtail_ref[D1:D1 + F1, :]                         # [128, 64]
        w_fc3 = wtail_ref[D1 + F1:D1 + F1 + F2, 0:F3]            # [64, 32]

        # --- GCN layer 1: relu( scale1 * (A @ (X @ W1)) + shift1' )
        xw = jnp.dot(x_ref[...].astype(bf16), w_conv1, preferred_element_type=f32)
        h = jnp.dot(a, xw.astype(bf16), preferred_element_type=f32)
        h = jnp.maximum(h * seg("bn1_scale") + seg("bn1_shift"), 0.0)

        # --- GCN layer 2
        hw = jnp.dot(h.astype(bf16), w_conv2, preferred_element_type=f32)
        h2 = jnp.dot(a, hw.astype(bf16), preferred_element_type=f32)
        h2 = jnp.maximum(h2 * seg("bn2_scale") + seg("bn2_shift"), 0.0)

        # --- global_mean_pool as a matmul: pooled = P_mat @ h2
        g = jnp.dot(pool_ref[...], h2.astype(bf16), preferred_element_type=f32)   # [B, H]

        # --- protein MLP
        p = jnp.dot(prot_ref[...].astype(bf16), w_pfc1,
                    preferred_element_type=f32) + seg("p_fc1_b")
        p = jnp.maximum(p, 0.0)
        p = jnp.dot(p.astype(bf16), w_pfc2, preferred_element_type=f32) + seg("p_fc2_b")
        p = jnp.maximum(p, 0.0)                                                    # [B, 64]

        # --- fc1: concat-free -- g and p land in one [B, H+64] scratch, one MXU pass
        #     against the original (merged) [H+64, 128] weight.
        zcat_ref[:, 0:H] = g
        zcat_ref[:, H:H + D2] = p
        z = jnp.dot(zcat_ref[...].astype(bf16), w_fc1,
                    preferred_element_type=f32) + seg("fc1_b")
        z = jnp.maximum(z, 0.0)
        z = jnp.maximum(
            jnp.dot(z.astype(bf16), w_fc2, preferred_element_type=f32) + seg("fc2_b"), 0.0)
        z = jnp.maximum(
            jnp.dot(z.astype(bf16), w_fc3, preferred_element_type=f32) + seg("fc3_b"), 0.0)

        # --- fc4 (32 -> 1) on the VPU: multiply + lane reduce (keeps v5e off a
        #     decomposed-f32 MXU pass; MXU would be 1/128-lane utilized anyway).
        y = jnp.sum(z * seg("fc4_w"), axis=-1, keepdims=True) + seg("fc4_b")
        o_ref[...] = jax.nn.sigmoid(y)

    return kernel


def model2_forward(prepped, a_norm_bf16, pool_bf16, x, protein_flat):
    """Fused forward: one pallas_call, whole-array VMEM blocks (everything fits)."""
    dims, offs = prepped["dims"], prepped["offs"]
    num_graphs = pool_bf16.shape[0]
    num_nodes = a_norm_bf16.shape[0]
    kernel = _make_model2_kernel(dims, offs)

    args = (a_norm_bf16, x, pool_bf16, protein_flat,
            prepped["w_conv"], prepped["w_mid"], prepped["w_tail"], prepped["small"])

    H, P = dims["hidden_dim"], dims["protein_dim"]
    D1, D2 = dims["dim_p1"], dims["dim_p2"]
    F1, F2, F3 = dims["fc1_out"], dims["fc2_out"], dims["fc3_out"]
    N, B, Fin = num_nodes, num_graphs, dims["input_dim"]
    flops = 2 * (N * Fin * H + N * N * H            # conv1: XW, A@(XW)
                 + N * H * H + N * N * H            # conv2
                 + B * N * H                        # mean pool
                 + B * P * D1 + B * D1 * D2         # protein MLP
                 + B * (H + D2) * F1 + B * F1 * F2 + B * F2 * F3 + B * F3 * 1)
    bytes_accessed = sum(int(v.size) * v.dtype.itemsize for v in args) + B * 4

    vmem_spec = pl.BlockSpec(memory_space=pltpu.MemorySpace.VMEM)

    # TODO(synk): at realistic N (thousands of nodes) the A@(XW) matmuls must be
    # tiled with a BlockSpec grid (row panels "parallel", reduction axis last /
    # "arbitrary") budgeted against v7x's 64 MiB VMEM (not 128), with
    # vmem_limit_bytes set explicitly; batched requests should also get a leading
    # "parallel" grid axis so v7x's second TensorCore is used.
    return pl.pallas_call(
        kernel,
        out_shape=jax.ShapeDtypeStruct((num_graphs, 1), jnp.float32),
        in_specs=[vmem_spec] * len(args),
        out_specs=vmem_spec,
        scratch_shapes=[pltpu.VMEM((num_graphs, H + D2), jnp.float32)],
        cost_estimate=pl.CostEstimate(flops=flops, transcendentals=num_graphs,
                                      bytes_accessed=bytes_accessed),
    )(*args)


# ----------------------------------------------------------------------------
# Plain-JAX reference mirroring the kernel's bf16-input / f32-accumulate math
# ----------------------------------------------------------------------------
def _fold_bn(bn, conv_bias, eps=1e-5):
    gamma, beta, mean, var = bn
    scale = gamma / jnp.sqrt(var + eps)
    shift = beta - mean * scale + conv_bias * scale   # conv bias folded into BN shift
    return scale.astype(jnp.float32), shift.astype(jnp.float32)


def model2_reference(params, a_bf16, pool_bf16, x, protein_flat, eps=1e-5):
    f32, bf16 = jnp.float32, jnp.bfloat16
    s1, b1 = _fold_bn(params["bn1"], params["conv1_b"], eps)
    s2, b2 = _fold_bn(params["bn2"], params["conv2_b"], eps)

    xw = jnp.dot(x.astype(bf16), params["conv1_w"].astype(bf16), preferred_element_type=f32)
    h = jnp.dot(a_bf16, xw.astype(bf16), preferred_element_type=f32)
    h = jnp.maximum(h * s1[None, :] + b1[None, :], 0.0)
    hw = jnp.dot(h.astype(bf16), params["conv2_w"].astype(bf16), preferred_element_type=f32)
    h2 = jnp.dot(a_bf16, hw.astype(bf16), preferred_element_type=f32)
    h2 = jnp.maximum(h2 * s2[None, :] + b2[None, :], 0.0)
    g = jnp.dot(pool_bf16, h2.astype(bf16), preferred_element_type=f32)

    p = jnp.maximum(
        jnp.dot(protein_flat.astype(bf16), params["p_fc1_w"].astype(bf16),
                preferred_element_type=f32) + params["p_fc1_b"][None, :], 0.0)
    p = jnp.maximum(
        jnp.dot(p.astype(bf16), params["p_fc2_w"].astype(bf16),
                preferred_element_type=f32) + params["p_fc2_b"][None, :], 0.0)

    z = jnp.concatenate([g, p], axis=-1)
    z = jnp.maximum(
        jnp.dot(z.astype(bf16), params["fc1_w"].astype(bf16),
                preferred_element_type=f32) + params["fc1_b"][None, :], 0.0)
    z = jnp.maximum(
        jnp.dot(z.astype(bf16), params["fc2_w"].astype(bf16),
                preferred_element_type=f32) + params["fc2_b"][None, :], 0.0)
    z = jnp.maximum(
        jnp.dot(z.astype(bf16), params["fc3_w"].astype(bf16),
                preferred_element_type=f32) + params["fc3_b"][None, :], 0.0)
    y = jnp.dot(z, params["fc4_w"], preferred_element_type=f32) + params["fc4_b"][None, :]
    return jax.nn.sigmoid(y)


# ----------------------------------------------------------------------------
# Glue (hoisted out of the per-call path): adjacency, pooling, param packing
# ----------------------------------------------------------------------------
def build_gcn_adjacency(edge_index, num_nodes):
    """Dense D^-1/2 (A + I) D^-1/2, A[dst, src] = 1 per edge (PyG GCN norm).
    NOTE: adds self-loops unconditionally; fine here since the edge list has none
    (PyG's add_remaining_self_loops would skip explicit ones)."""
    src, dst = edge_index[0], edge_index[1]
    a = jnp.zeros((num_nodes, num_nodes), jnp.float32)
    a = a.at[dst, src].add(1.0)
    a = a + jnp.eye(num_nodes, dtype=jnp.float32)
    deg = a.sum(axis=1)
    dinv = jnp.where(deg > 0, 1.0 / jnp.sqrt(deg), 0.0)
    return dinv[:, None] * a * dinv[None, :]


def build_pool_matrix(batch, num_graphs, num_nodes):
    onehot = (batch[None, :] == jnp.arange(num_graphs)[:, None]).astype(jnp.float32)
    counts = onehot.sum(axis=1, keepdims=True)
    return onehot / jnp.maximum(counts, 1.0)


def prepare_graph(edge_index, batch, num_nodes, num_graphs):
    """Graph-structure operands, pre-cast to bf16 ONCE (no per-call casts)."""
    a = build_gcn_adjacency(edge_index, num_nodes).astype(jnp.bfloat16)
    pmat = build_pool_matrix(batch, num_graphs, num_nodes).astype(jnp.bfloat16)
    return a, pmat


def _pack_small(pieces):
    """Pack small f32 vectors into one [1, K] slab; every segment starts at a
    128-lane-aligned offset so in-kernel static slices hit vreg boundaries."""
    offs, chunks, cur = {}, [], 0
    for name, v in pieces:
        v = jnp.asarray(v, jnp.float32).reshape(-1)
        n = int(v.shape[0])
        pad = (-n) % 128
        offs[name] = (cur, n)
        chunks.append(jnp.pad(v, (0, pad)))
        cur += n + pad
    return jnp.concatenate(chunks).reshape(1, -1), offs


def prepare_inference_params(params, input_dim, hidden_dim, protein_dim, eps=1e-5):
    """Fold BN(eval)+conv bias, pack weights into 3 bf16 slabs + 1 small f32 slab."""
    f32, bf16 = jnp.float32, jnp.bfloat16
    H = hidden_dim
    D1 = params["p_fc1_w"].shape[1]          # 256
    D2 = params["p_fc2_w"].shape[1]          # 64
    F1 = params["fc1_w"].shape[1]            # 128
    F2 = params["fc2_w"].shape[1]            # 64
    F3 = params["fc3_w"].shape[1]            # 32
    dims = dict(input_dim=input_dim, hidden_dim=H, protein_dim=protein_dim,
                dim_p1=D1, dim_p2=D2, fc1_out=F1, fc2_out=F2, fc3_out=F3)

    s1, b1 = _fold_bn(params["bn1"], params["conv1_b"], eps)
    s2, b2 = _fold_bn(params["bn2"], params["conv2_b"], eps)

    # bf16 weight slabs (row-stacked; offsets are multiples of 16 at these dims).
    w_conv = jnp.concatenate([params["conv1_w"], params["conv2_w"]], axis=0).astype(bf16)
    fc1_pad = jnp.zeros((H + D2, D1), f32).at[:, :F1].set(params["fc1_w"])
    w_mid = jnp.concatenate([params["p_fc1_w"], fc1_pad], axis=0).astype(bf16)
    fc3_pad = jnp.zeros((F2, D2), f32).at[:, :F3].set(params["fc3_w"])
    w_tail = jnp.concatenate([params["p_fc2_w"], params["fc2_w"], fc3_pad], axis=0).astype(bf16)

    small, offs = _pack_small([
        ("bn1_scale", s1), ("bn1_shift", b1),
        ("bn2_scale", s2), ("bn2_shift", b2),
        ("p_fc1_b", params["p_fc1_b"]), ("p_fc2_b", params["p_fc2_b"]),
        ("fc1_b", params["fc1_b"]), ("fc2_b", params["fc2_b"]), ("fc3_b", params["fc3_b"]),
        ("fc4_w", params["fc4_w"].reshape(-1)), ("fc4_b", params["fc4_b"].reshape(-1)),
    ])
    return {"dims": dims, "offs": offs,
            "w_conv": w_conv, "w_mid": w_mid, "w_tail": w_tail, "small": small}


# ----------------------------------------------------------------------------
# Deterministic parameter init
# ----------------------------------------------------------------------------
def init_params(key, input_dim, hidden_dim, protein_flat_dim):
    dim_p1 = 256
    keys = jax.random.split(key, 20)
    ki = iter(range(20))

    def lin(k_w, fan_in, fan_out):
        w = jax.random.normal(k_w, (fan_in, fan_out), jnp.float32) * (1.0 / jnp.sqrt(fan_in))
        b = jnp.zeros((fan_out,), jnp.float32)
        return w, b

    p = {}
    p["conv1_w"], p["conv1_b"] = lin(keys[next(ki)], input_dim, hidden_dim)
    p["conv2_w"], p["conv2_b"] = lin(keys[next(ki)], hidden_dim, hidden_dim)
    # BatchNorm1d params: (gamma, beta, running_mean, running_var)
    p["bn1"] = (1.0 + 0.1 * jax.random.normal(keys[next(ki)], (hidden_dim,), jnp.float32),
                0.1 * jax.random.normal(keys[next(ki)], (hidden_dim,), jnp.float32),
                jnp.zeros((hidden_dim,), jnp.float32),
                jnp.ones((hidden_dim,), jnp.float32))
    p["bn2"] = (1.0 + 0.1 * jax.random.normal(keys[next(ki)], (hidden_dim,), jnp.float32),
                0.1 * jax.random.normal(keys[next(ki)], (hidden_dim,), jnp.float32),
                jnp.zeros((hidden_dim,), jnp.float32),
                jnp.ones((hidden_dim,), jnp.float32))
    p["p_fc1_w"], p["p_fc1_b"] = lin(keys[next(ki)], protein_flat_dim, dim_p1)
    p["p_fc2_w"], p["p_fc2_b"] = lin(keys[next(ki)], dim_p1, 64)
    p["fc1_w"], p["fc1_b"] = lin(keys[next(ki)], hidden_dim + 64, 128)
    p["fc2_w"], p["fc2_b"] = lin(keys[next(ki)], 128, 64)
    p["fc3_w"], p["fc3_b"] = lin(keys[next(ki)], 64, 32)
    p["fc4_w"], p["fc4_b"] = lin(keys[next(ki)], 32, 1)
    return p


if __name__ == "__main__":
    key = jax.random.PRNGKey(0)
    k_x, k_p, k_param = jax.random.split(key, 3)

    # Small shapes consistent with the module's forward:
    #   graph:   N = 16 nodes, input_dim = 16 node features, B = 2 graphs
    #   protein: [B, 8, 16] -> flattened to [B, 128]
    input_dim, hidden_dim = 16, 32
    num_nodes, num_graphs = 16, 2

    x = jax.random.normal(k_x, (num_nodes, input_dim), jnp.float32)
    # Two chain graphs (nodes 0..7 and 8..15), bidirectional edges.
    src = jnp.array(list(range(0, 7)) + list(range(8, 15)), jnp.int32)
    dst = src + 1
    edge_index = jnp.stack([jnp.concatenate([src, dst]),
                            jnp.concatenate([dst, src])], axis=0)    # [2, E]
    batch = jnp.concatenate([jnp.zeros(8, jnp.int32), jnp.ones(8, jnp.int32)])
    protein_data = jax.random.normal(k_p, (num_graphs, 8, 16), jnp.float32)
    protein_flat = protein_data.reshape(num_graphs, -1)

    params = init_params(k_param, input_dim, hidden_dim,
                         protein_flat_dim=protein_flat.shape[1])

    # Hoisted once per (graph structure, params) -- NOT re-done per forward call.
    a_norm_bf16, pool_bf16 = prepare_graph(edge_index, batch, num_nodes, num_graphs)
    prepped = prepare_inference_params(params, input_dim, hidden_dim,
                                       protein_dim=protein_flat.shape[1])

    out = model2_forward(prepped, a_norm_bf16, pool_bf16, x, protein_flat)
    out = jax.block_until_ready(out)

    ref = model2_reference(params, a_norm_bf16, pool_bf16, x, protein_flat)
    assert out.shape == (num_graphs, 1)
    assert bool(jnp.all((out >= 0.0) & (out <= 1.0)))
    assert bool(jnp.allclose(out, ref, atol=2e-2, rtol=0.0)), (out, ref)
    print("KERNEL_OK")
</pallas_src>

<mosaic_0001>
module attributes {stable_mosaic.version = 11 : i64} {
  func.func @kernel(%arg0: memref<16x16xbf16, #tpu.memory_space<vmem>>, %arg1: memref<16x16xf32, #tpu.memory_space<vmem>>, %arg2: memref<2x16xbf16, #tpu.memory_space<vmem>>, %arg3: memref<2x128xf32, #tpu.memory_space<vmem>>, %arg4: memref<48x32xbf16, #tpu.memory_space<vmem>>, %arg5: memref<224x256xbf16, #tpu.memory_space<vmem>>, %arg6: memref<448x64xbf16, #tpu.memory_space<vmem>>, %arg7: memref<1x1536xf32, #tpu.memory_space<vmem>>, %arg8: memref<2x1xf32, #tpu.memory_space<vmem>>, %arg9: memref<2x96xf32, #tpu.memory_space<vmem>>) attributes {dimension_semantics = [], scalar_prefetch = 0 : i64, scratch_operands = 1 : i64, tpu.core_type = #tpu.core_type<tc>} {
    %c0 = arith.constant 0 : index
    %c0_0 = arith.constant 0 : index
    %0 = vector.load %arg0[%c0, %c0_0] : memref<16x16xbf16, #tpu.memory_space<vmem>>, vector<16x16xbf16>
    %c0_1 = arith.constant 0 : index
    %c0_2 = arith.constant 0 : index
    %1 = vector.load %arg4[%c0_1, %c0_2] : memref<48x32xbf16, #tpu.memory_space<vmem>>, vector<16x32xbf16>
    %c16 = arith.constant 16 : index
    %c0_3 = arith.constant 0 : index
    %2 = vector.load %arg4[%c16, %c0_3] : memref<48x32xbf16, #tpu.memory_space<vmem>>, vector<32x32xbf16>
    %c0_4 = arith.constant 0 : index
    %c0_5 = arith.constant 0 : index
    %3 = vector.load %arg5[%c0_4, %c0_5] : memref<224x256xbf16, #tpu.memory_space<vmem>>, vector<128x256xbf16>
    %c128 = arith.constant 128 : index
    %c0_6 = arith.constant 0 : index
    %4 = vector.load %arg5[%c128, %c0_6] : memref<224x256xbf16, #tpu.memory_space<vmem>>, vector<96x128xbf16>
    %c0_7 = arith.constant 0 : index
    %c0_8 = arith.constant 0 : index
    %5 = vector.load %arg6[%c0_7, %c0_8] : memref<448x64xbf16, #tpu.memory_space<vmem>>, vector<256x64xbf16>
    %c256 = arith.constant 256 : index
    %c0_9 = arith.constant 0 : index
    %6 = vector.load %arg6[%c256, %c0_9] : memref<448x64xbf16, #tpu.memory_space<vmem>>, vector<128x64xbf16>
    %c384 = arith.constant 384 : index
    %c0_10 = arith.constant 0 : index
    %7 = vector.load %arg6[%c384, %c0_10] : memref<448x64xbf16, #tpu.memory_space<vmem>>, vector<64x32xbf16>
    %c0_11 = arith.constant 0 : index
    %c0_12 = arith.constant 0 : index
    %8 = vector.load %arg1[%c0_11, %c0_12] : memref<16x16xf32, #tpu.memory_space<vmem>>, vector<16x16xf32>
    %9 = arith.truncf %8 : vector<16x16xf32> to vector<16x16xbf16>
    %cst = arith.constant dense<0.000000e+00> : vector<16x32xf32>
    %10 = tpu.matmul %9, %1, %cst {dimension_numbers = #tpu.dot_dimension_numbers<[1], [0], [0], [1], [0, 0, 1, 1], [], []>} : vector<16x16xbf16>, vector<16x32xbf16>, vector<16x32xf32> -> vector<16x32xf32>
    %11 = arith.truncf %10 : vector<16x32xf32> to vector<16x32xbf16>
    %cst_13 = arith.constant dense<0.000000e+00> : vector<16x32xf32>
    %12 = tpu.matmul %0, %11, %cst_13 {dimension_numbers = #tpu.dot_dimension_numbers<[1], [0], [0], [1], [0, 0, 1, 1], [], []>} : vector<16x16xbf16>, vector<16x32xbf16>, vector<16x32xf32> -> vector<16x32xf32>
    %c0_14 = arith.constant 0 : index
    %c0_15 = arith.constant 0 : index
    %13 = vector.load %arg7[%c0_14, %c0_15] : memref<1x1536xf32, #tpu.memory_space<vmem>>, vector<1x32xf32>
    %14 = vector.broadcast %13 : vector<1x32xf32> to vector<16x32xf32>
    %15 = arith.mulf %12, %14 : vector<16x32xf32>
    %c0_16 = arith.constant 0 : index
    %c128_17 = arith.constant 128 : index
    %16 = vector.load %arg7[%c0_16, %c128_17] : memref<1x1536xf32, #tpu.memory_space<vmem>>, vector<1x32xf32>
    %17 = vector.broadcast %16 : vector<1x32xf32> to vector<16x32xf32>
    %18 = arith.addf %15, %17 : vector<16x32xf32>
    %cst_18 = arith.constant 0.000000e+00 : f32
    %19 = vector.broadcast %cst_18 : f32 to vector<16x32xf32>
    %20 = arith.maximumf %18, %19 : vector<16x32xf32>
    %21 = arith.truncf %20 : vector<16x32xf32> to vector<16x32xbf16>
    %cst_19 = arith.constant dense<0.000000e+00> : vector<16x32xf32>
    %22 = tpu.matmul %21, %2, %cst_19 {dimension_numbers = #tpu.dot_dimension_numbers<[1], [0], [0], [1], [0, 0, 1, 1], [], []>} : vector<16x32xbf16>, vector<32x32xbf16>, vector<16x32xf32> -> vector<16x32xf32>
    %23 = arith.truncf %22 : vector<16x32xf32> to vector<16x32xbf16>
    %cst_20 = arith.constant dense<0.000000e+00> : vector<16x32xf32>
    %24 = tpu.matmul %0, %23, %cst_20 {dimension_numbers = #tpu.dot_dimension_numbers<[1], [0], [0], [1], [0, 0, 1, 1], [], []>} : vector<16x16xbf16>, vector<16x32xbf16>, vector<16x32xf32> -> vector<16x32xf32>
    %c0_21 = arith.constant 0 : index
    %c256_22 = arith.constant 256 : index
    %25 = vector.load %arg7[%c0_21, %c256_22] : memref<1x1536xf32, #tpu.memory_space<vmem>>, vector<1x32xf32>
    %26 = vector.broadcast %25 : vector<1x32xf32> to vector<16x32xf32>
    %27 = arith.mulf %24, %26 : vector<16x32xf32>
    %c0_23 = arith.constant 0 : index
    %c384_24 = arith.constant 384 : index
    %28 = vector.load %arg7[%c0_23, %c384_24] : memref<1x1536xf32, #tpu.memory_space<vmem>>, vector<1x32xf32>
    %29 = vector.broadcast %28 : vector<1x32xf32> to vector<16x32xf32>
    %30 = arith.addf %27, %29 : vector<16x32xf32>
    %cst_25 = arith.constant 0.000000e+00 : f32
    %31 = vector.broadcast %cst_25 : f32 to vector<16x32xf32>
    %32 = arith.maximumf %30, %31 : vector<16x32xf32>
    %c0_26 = arith.constant 0 : index
    %c0_27 = arith.constant 0 : index
    %33 = vector.load %arg2[%c0_26, %c0_27] : memref<2x16xbf16, #tpu.memory_space<vmem>>, vector<2x16xbf16>
    %34 = arith.truncf %32 : vector<16x32xf32> to vector<16x32xbf16>
    %cst_28 = arith.constant dense<0.000000e+00> : vector<2x32xf32>
    %35 = tpu.matmul %33, %34, %cst_28 {dimension_numbers = #tpu.dot_dimension_numbers<[1], [0], [0], [1], [0, 0, 1, 1], [], []>} : vector<2x16xbf16>, vector<16x32xbf16>, vector<2x32xf32> -> vector<2x32xf32>
    %c0_29 = arith.constant 0 : index
    %c0_30 = arith.constant 0 : index
    %36 = vector.load %arg3[%c0_29, %c0_30] : memref<2x128xf32, #tpu.memory_space<vmem>>, vector<2x128xf32>
    %37 = arith.truncf %36 : vector<2x128xf32> to vector<2x128xbf16>
    %cst_31 = arith.constant dense<0.000000e+00> : vector<2x256xf32>
    %38 = tpu.matmul %37, %3, %cst_31 {dimension_numbers = #tpu.dot_dimension_numbers<[1], [0], [0], [1], [0, 0, 1, 1], [], []>} : vector<2x128xbf16>, vector<128x256xbf16>, vector<2x256xf32> -> vector<2x256xf32>
    %c0_32 = arith.constant 0 : index
    %c512 = arith.constant 512 : index
    %39 = vector.load %arg7[%c0_32, %c512] : memref<1x1536xf32, #tpu.memory_space<vmem>>, vector<1x256xf32>
    %40 = vector.broadcast %39 : vector<1x256xf32> to vector<2x256xf32>
    %41 = arith.addf %38, %40 : vector<2x256xf32>
    %cst_33 = arith.constant 0.000000e+00 : f32
    %42 = vector.broadcast %cst_33 : f32 to vector<2x256xf32>
    %43 = arith.maximumf %41, %42 : vector<2x256xf32>
    %44 = arith.truncf %43 : vector<2x256xf32> to vector<2x256xbf16>
    %cst_34 = arith.constant dense<0.000000e+00> : vector<2x64xf32>
    %45 = tpu.matmul %44, %5, %cst_34 {dimension_numbers = #tpu.dot_dimension_numbers<[1], [0], [0], [1], [0, 0, 1, 1], [], []>} : vector<2x256xbf16>, vector<256x64xbf16>, vector<2x64xf32> -> vector<2x64xf32>
    %c0_35 = arith.constant 0 : index
    %c768 = arith.constant 768 : index
    %46 = vector.load %arg7[%c0_35, %c768] : memref<1x1536xf32, #tpu.memory_space<vmem>>, vector<1x64xf32>
    %47 = vector.broadcast %46 : vector<1x64xf32> to vector<2x64xf32>
    %48 = arith.addf %45, %47 : vector<2x64xf32>
    %cst_36 = arith.constant 0.000000e+00 : f32
    %49 = vector.broadcast %cst_36 : f32 to vector<2x64xf32>
    %50 = arith.maximumf %48, %49 : vector<2x64xf32>
    %c0_37 = arith.constant 0 : index
    %c0_38 = arith.constant 0 : index
    %51 = vector.load %arg9[%c0_37, %c0_38] : memref<2x96xf32, #tpu.memory_space<vmem>>, vector<2x32xf32>
    tpu.vector_store %arg9[%c0_37, %c0_38], %35 {strides = array<i32>} : memref<2x96xf32, #tpu.memory_space<vmem>>, vector<2x32xf32>,
    %c0_39 = arith.constant 0 : index
    %c32 = arith.constant 32 : index
    %52 = vector.load %arg9[%c0_39, %c32] : memref<2x96xf32, #tpu.memory_space<vmem>>, vector<2x64xf32>
    tpu.vector_store %arg9[%c0_39, %c32], %50 {strides = array<i32>} : memref<2x96xf32, #tpu.memory_space<vmem>>, vector<2x64xf32>,
    %c0_40 = arith.constant 0 : index
    %c0_41 = arith.constant 0 : index
    %53 = vector.load %arg9[%c0_40, %c0_41] : memref<2x96xf32, #tpu.memory_space<vmem>>, vector<2x96xf32>
    %54 = arith.truncf %53 : vector<2x96xf32> to vector<2x96xbf16>
    %cst_42 = arith.constant dense<0.000000e+00> : vector<2x128xf32>
    %55 = tpu.matmul %54, %4, %cst_42 {dimension_numbers = #tpu.dot_dimension_numbers<[1], [0], [0], [1], [0, 0, 1, 1], [], []>} : vector<2x96xbf16>, vector<96x128xbf16>, vector<2x128xf32> -> vector<2x128xf32>
    %c0_43 = arith.constant 0 : index
    %c896 = arith.constant 896 : index
    %56 = vector.load %arg7[%c0_43, %c896] : memref<1x1536xf32, #tpu.memory_space<vmem>>, vector<1x128xf32>
    %57 = vector.broadcast %56 : vector<1x128xf32> to vector<2x128xf32>
    %58 = arith.addf %55, %57 : vector<2x128xf32>
    %cst_44 = arith.constant 0.000000e+00 : f32
    %59 = vector.broadcast %cst_44 : f32 to vector<2x128xf32>
    %60 = arith.maximumf %58, %59 : vector<2x128xf32>
    %61 = arith.truncf %60 : vector<2x128xf32> to vector<2x128xbf16>
    %cst_45 = arith.constant dense<0.000000e+00> : vector<2x64xf32>
    %62 = tpu.matmul %61, %6, %cst_45 {dimension_numbers = #tpu.dot_dimension_numbers<[1], [0], [0], [1], [0, 0, 1, 1], [], []>} : vector<2x128xbf16>, vector<128x64xbf16>, vector<2x64xf32> -> vector<2x64xf32>
    %c0_46 = arith.constant 0 : index
    %c1024 = arith.constant 1024 : index
    %63 = vector.load %arg7[%c0_46, %c1024] : memref<1x1536xf32, #tpu.memory_space<vmem>>, vector<1x64xf32>
    %64 = vector.broadcast %63 : vector<1x64xf32> to vector<2x64xf32>
    %65 = arith.addf %62, %64 : vector<2x64xf32>
    %cst_47 = arith.constant 0.000000e+00 : f32
    %66 = vector.broadcast %cst_47 : f32 to vector<2x64xf32>
    %67 = arith.maximumf %65, %66 : vector<2x64xf32>
    %68 = arith.truncf %67 : vector<2x64xf32> to vector<2x64xbf16>
    %cst_48 = arith.constant dense<0.000000e+00> : vector<2x32xf32>
    %69 = tpu.matmul %68, %7, %cst_48 {dimension_numbers = #tpu.dot_dimension_numbers<[1], [0], [0], [1], [0, 0, 1, 1], [], []>} : vector<2x64xbf16>, vector<64x32xbf16>, vector<2x32xf32> -> vector<2x32xf32>
    %c0_49 = arith.constant 0 : index
    %c1152 = arith.constant 1152 : index
    %70 = vector.load %arg7[%c0_49, %c1152] : memref<1x1536xf32, #tpu.memory_space<vmem>>, vector<1x32xf32>
    %71 = vector.broadcast %70 : vector<1x32xf32> to vector<2x32xf32>
    %72 = arith.addf %69, %71 : vector<2x32xf32>
    %cst_50 = arith.constant 0.000000e+00 : f32
    %73 = vector.broadcast %cst_50 : f32 to vector<2x32xf32>
    %74 = arith.maximumf %72, %73 : vector<2x32xf32>
    %c0_51 = arith.constant 0 : index
    %c1280 = arith.constant 1280 : index
    %75 = vector.load %arg7[%c0_51, %c1280] : memref<1x1536xf32, #tpu.memory_space<vmem>>, vector<1x32xf32>
    %76 = vector.broadcast %75 : vector<1x32xf32> to vector<2x32xf32>
    %77 = arith.mulf %74, %76 : vector<2x32xf32>
    %cst_52 = arith.constant dense<0.000000e+00> : vector<2xf32>
    %78 = vector.multi_reduction <add>, %77, %cst_52 [1] : vector<2x32xf32> to vector<2xf32>
    %79 = vector.shape_cast %78 : vector<2xf32> to vector<2x1xf32>
    %c0_53 = arith.constant 0 : index
    %c1408 = arith.constant 1408 : index
    %80 = vector.load %arg7[%c0_53, %c1408] : memref<1x1536xf32, #tpu.memory_space<vmem>>, vector<1x1xf32>
    %81 = vector.broadcast %80 : vector<1x1xf32> to vector<2x1xf32>
    %82 = arith.addf %79, %81 : vector<2x1xf32>
    %83 = arith.negf %82 : vector<2x1xf32>
    %84 = math.exp %83 : vector<2x1xf32>
    %cst_54 = arith.constant 1.000000e+00 : f32
    %85 = vector.broadcast %cst_54 : f32 to vector<2x1xf32>
    %86 = arith.addf %85, %84 : vector<2x1xf32>
    %87 = arith.divf %85, %86 : vector<2x1xf32>
    %c0_55 = arith.constant 0 : index
    %c0_56 = arith.constant 0 : index
    %88 = vector.load %arg8[%c0_55, %c0_56] : memref<2x1xf32, #tpu.memory_space<vmem>>, vector<2x1xf32>
    tpu.vector_store %arg8[%c0_55, %c0_56], %87 {strides = array<i32>} : memref<2x1xf32, #tpu.memory_space<vmem>>, vector<2x1xf32>,
    return
  }
}

</mosaic_0001>

<llo_original>
// kernel: tpu_custom_call.1
$region0: #{tpu_custom_call.1}
  #allocation0 [shape = 'u32[]', space=smem, size = 0x4, offset = 0x4, fixed_abs, tag = 'smem constant byte address 0x4 - core index']
  #allocation1 [shape = 'u32[144,128]{1,0:T(1,128)}', space=vmem, size = 0x12000, scoped, tag = 'internal scratch']
  #allocation2 [shape = 'f32[2,96]{1,0:T(2,128)}', space=vmem, size = 0x400, scoped, tag = 'scratch operand']
  %s0 = inlined_call_operand.vmem [shape: bf16[16,16], index: 0, kind: input, shape index: {}]
  %s1 = inlined_call_operand.vmem [shape: f32[16,16], index: 1, kind: input, shape index: {}]
  %s2 = inlined_call_operand.vmem [shape: bf16[2,16], index: 2, kind: input, shape index: {}]
  %s3 = inlined_call_operand.vmem [shape: f32[2,128], index: 3, kind: input, shape index: {}]
  %s4 = inlined_call_operand.vmem [shape: bf16[48,32], index: 4, kind: input, shape index: {}]
  %s5 = inlined_call_operand.vmem [shape: bf16[224,256], index: 5, kind: input, shape index: {}]
  %s6 = inlined_call_operand.vmem [shape: bf16[448,64], index: 6, kind: input, shape index: {}]
  %s7 = inlined_call_operand.vmem [shape: f32[1,1536], index: 7, kind: input, shape index: {}]
  %s8 = inlined_call_operand.vmem [shape: f32[2,1], index: 8, kind: output, shape index: {}]
  %s9 = sld [smem:[#allocation0]]
  $region42: #{tpu_custom_call.1} parent=0
    _
  %s11 = ssub.s32 1, %s9
  %s12 = scalar_select 0, %s11, %s9
  // Predicated region
  $region2: #{tpu_custom_call.1} parent=0 // pred_check
    _
  $region3: #{tpu_custom_call.1} parent=0 // pred_check_branch
    %14 = sbr.rel (0) target = $region5
  $region4: #{tpu_custom_call.1} parent=0 // pred_region
    _
  $region5: #{tpu_custom_call.1} parent=0 // pred_fallthru
    _
  // Predicated region
  $region6: #{tpu_custom_call.1} parent=0 // pred_check
    _
  $region7: #{tpu_custom_call.1} parent=0 // pred_check_branch
    %16 = sbr.rel (0) target = $region9
  $region8: #{tpu_custom_call.1} parent=0 // pred_region
    _
  $region9: #{tpu_custom_call.1} parent=0 // pred_fallthru
    _
  // Predicated region
  $region10: #{tpu_custom_call.1} parent=0 // pred_check
    _
  $region11: #{tpu_custom_call.1} parent=0 // pred_check_branch
    %18 = sbr.rel (0) target = $region13
  $region12: #{tpu_custom_call.1} parent=0 // pred_region
    _
  $region13: #{tpu_custom_call.1} parent=0 // pred_fallthru
    _
  // Predicated region
  $region14: #{tpu_custom_call.1} parent=0 // pred_check
    _
  $region15: #{tpu_custom_call.1} parent=0 // pred_check_branch
    %20 = sbr.rel (0) target = $region17
  $region16: #{tpu_custom_call.1} parent=0 // pred_region
    _
  $region17: #{tpu_custom_call.1} parent=0 // pred_fallthru
    _
  // Predicated region
  $region18: #{tpu_custom_call.1} parent=0 // pred_check
    _
  $region19: #{tpu_custom_call.1} parent=0 // pred_check_branch
    %22 = sbr.rel (0) target = $region21
  $region20: #{tpu_custom_call.1} parent=0 // pred_region
    _
  $region21: #{tpu_custom_call.1} parent=0 // pred_fallthru
    _
  // Predicated region
  $region22: #{tpu_custom_call.1} parent=0 // pred_check
    _
  $region23: #{tpu_custom_call.1} parent=0 // pred_check_branch
    %24 = sbr.rel (0) target = $region25
  $region24: #{tpu_custom_call.1} parent=0 // pred_region
    _
  $region25: #{tpu_custom_call.1} parent=0 // pred_fallthru
    _
  // Predicated region
  $region26: #{tpu_custom_call.1} parent=0 // pred_check
    _
  $region27: #{tpu_custom_call.1} parent=0 // pred_check_branch
    %26 = sbr.rel (0) target = $region29
  $region28: #{tpu_custom_call.1} parent=0 // pred_region
    _
  $region29: #{tpu_custom_call.1} parent=0 // pred_fallthru
    _
  // Predicated region
  $region30: #{tpu_custom_call.1} parent=0 // pred_check
    _
  $region31: #{tpu_custom_call.1} parent=0 // pred_check_branch
    %28 = sbr.rel (0) target = $region33
  $region32: #{tpu_custom_call.1} parent=0 // pred_region
    _
  $region33: #{tpu_custom_call.1} parent=0 // pred_fallthru
    _
  %v30 = vld [vmem:[%s0] sm:$0xf]
  %v31 = vld [vmem:[%s0 + $0x4] sm:$0xf]
  %v32 = vld [vmem:[%s4] sm:$0xf]
  %v33 = vld [vmem:[%s4 + $0x4] sm:$0xf]
  %v34 = vld [vmem:[%s4 + $0x8] sm:$0xf]
  %v35 = vld [vmem:[%s4 + $0xc] sm:$0xf]
  %v36 = vld [vmem:[%s4 + $0x10] sm:$0xf]
  %v37 = vld [vmem:[%s4 + $0x14] sm:$0xf]
  %v38 = vld [vmem:[%s5] sm:$0xff]
  %v39 = vld [vmem:[%s5 + $0x8] sm:$0xff]
  %v40 = vld [vmem:[%s5 + $0x10] sm:$0xff]
  %v41 = vld [vmem:[%s5 + $0x18] sm:$0xff]
  %v42 = vld [vmem:[%s5 + $0x20] sm:$0xff]
  %v43 = vld [vmem:[%s5 + $0x28] sm:$0xff]
  %v44 = vld [vmem:[%s5 + $0x30] sm:$0xff]
  %v45 = vld [vmem:[%s5 + $0x38] sm:$0xff]
  %v46 = vld [vmem:[%s5 + $0x40] sm:$0xff]
  %v47 = vld [vmem:[%s5 + $0x48] sm:$0xff]
  %v48 = vld [vmem:[%s5 + $0x50] sm:$0xff]
  %v49 = vld [vmem:[%s5 + $0x58] sm:$0xff]
  %v50 = vld [vmem:[%s5 + $0x60] sm:$0xff]
  %v51 = vld [vmem:[%s5 + $0x68] sm:$0xff]
  %v52 = vld [vmem:[%s5 + $0x70] sm:$0xff]
  %v53 = vld [vmem:[%s5 + $0x78] sm:$0xff]
  %v54 = vld [vmem:[%s5 + $0x80] sm:$0xf]
  %v55 = vld [vmem:[%s5 + $0x88] sm:$0xf]
  %v56 = vld [vmem:[%s5 + $0x90] sm:$0xf]
  %v57 = vld [vmem:[%s5 + $0x98] sm:$0xf]
  %v58 = vld [vmem:[%s5 + $0xa0] sm:$0xf]
  %v59 = vld [vmem:[%s5 + $0xa8] sm:$0xf]
  %v60 = vld [vmem:[%s5 + $0xb0] sm:$0xf]
  %v61 = vld [vmem:[%s5 + $0xb8] sm:$0xf]
  %v62 = vld [vmem:[%s5 + $0xc0] sm:$0xf]
  %v63 = vld [vmem:[%s5 + $0xc8] sm:$0xf]
  %v64 = vld [vmem:[%s5 + $0xd0] sm:$0xf]
  %v65 = vld [vmem:[%s5 + $0xd8] sm:$0xf]
  %v66 = vld [vmem:[%s6] sm:$0xf]
  %v67 = vld [vmem:[%s6 + $0x4] sm:$0xf]
  %v68 = vld [vmem:[%s6 + $0x8] sm:$0xf]
  %v69 = vld [vmem:[%s6 + $0xc] sm:$0xf]
  %v70 = vld [vmem:[%s6 + $0x10] sm:$0xf]
  %v71 = vld [vmem:[%s6 + $0x14] sm:$0xf]
  %v72 = vld [vmem:[%s6 + $0x18] sm:$0xf]
  %v73 = vld [vmem:[%s6 + $0x1c] sm:$0xf]
  %v74 = vld [vmem:[%s6 + $0x20] sm:$0xf]
  %v75 = vld [vmem:[%s6 + $0x24] sm:$0xf]
  %v76 = vld [vmem:[%s6 + $0x28] sm:$0xf]
  %v77 = vld [vmem:[%s6 + $0x2c] sm:$0xf]
  %v78 = vld [vmem:[%s6 + $0x30] sm:$0xf]
  %v79 = vld [vmem:[%s6 + $0x34] sm:$0xf]
  %v80 = vld [vmem:[%s6 + $0x38] sm:$0xf]
  %v81 = vld [vmem:[%s6 + $0x3c] sm:$0xf]
  %v82 = vld [vmem:[%s6 + $0x40] sm:$0xf]
  %v83 = vld [vmem:[%s6 + $0x44] sm:$0xf]
  %v84 = vld [vmem:[%s6 + $0x48] sm:$0xf]
  %v85 = vld [vmem:[%s6 + $0x4c] sm:$0xf]
  %v86 = vld [vmem:[%s6 + $0x50] sm:$0xf]
  %v87 = vld [vmem:[%s6 + $0x54] sm:$0xf]
  %v88 = vld [vmem:[%s6 + $0x58] sm:$0xf]
  %v89 = vld [vmem:[%s6 + $0x5c] sm:$0xf]
  %v90 = vld [vmem:[%s6 + $0x60] sm:$0xf]
  %v91 = vld [vmem:[%s6 + $0x64] sm:$0xf]
  %v92 = vld [vmem:[%s6 + $0x68] sm:$0xf]
  %v93 = vld [vmem:[%s6 + $0x6c] sm:$0xf]
  %v94 = vld [vmem:[%s6 + $0x70] sm:$0xf]
  %v95 = vld [vmem:[%s6 + $0x74] sm:$0xf]
  %v96 = vld [vmem:[%s6 + $0x78] sm:$0xf]
  %v97 = vld [vmem:[%s6 + $0x7c] sm:$0xf]
  %v98 = vld [vmem:[%s6 + $0x80] sm:$0xf]
  %v99 = vld [vmem:[%s6 + $0x84] sm:$0xf]
  %v100 = vld [vmem:[%s6 + $0x88] sm:$0xf]
  %v101 = vld [vmem:[%s6 + $0x8c] sm:$0xf]
  %v102 = vld [vmem:[%s6 + $0x90] sm:$0xf]
  %v103 = vld [vmem:[%s6 + $0x94] sm:$0xf]
  %v104 = vld [vmem:[%s6 + $0x98] sm:$0xf]
  %v105 = vld [vmem:[%s6 + $0x9c] sm:$0xf]
  %v106 = vld [vmem:[%s6 + $0xa0] sm:$0xf]
  %v107 = vld [vmem:[%s6 + $0xa4] sm:$0xf]
  %v108 = vld [vmem:[%s6 + $0xa8] sm:$0xf]
  %v109 = vld [vmem:[%s6 + $0xac] sm:$0xf]
  %v110 = vld [vmem:[%s6 + $0xb0] sm:$0xf]
  %v111 = vld [vmem:[%s6 + $0xb4] sm:$0xf]
  %v112 = vld [vmem:[%s6 + $0xb8] sm:$0xf]
  %v113 = vld [vmem:[%s6 + $0xbc] sm:$0xf]
  %v114 = vld [vmem:[%s6 + $0xc0] sm:$0xf]
  %v115 = vld [vmem:[%s6 + $0xc4] sm:$0xf]
  %v116 = vld [vmem:[%s6 + $0xc8] sm:$0xf]
  %v117 = vld [vmem:[%s6 + $0xcc] sm:$0xf]
  %v118 = vld [vmem:[%s6 + $0xd0] sm:$0xf]
  %v119 = vld [vmem:[%s6 + $0xd4] sm:$0xf]
  %v120 = vld [vmem:[%s6 + $0xd8] sm:$0xf]
  %v121 = vld [vmem:[%s6 + $0xdc] sm:$0xf]
  %v122 = vld [vmem:[%s1] sm:$0xff]
  %v123 = vld [vmem:[%s1 + $0x8] sm:$0xff]
  %v124 = vpack.c.bf16 %v123, %v122
  %v127 = vunpack.c.l.b16 %v32
  %v128 = vunpack.c.l.b16 %v33
  %v129 = vpack.c.b16 %v128, %v127
  %vm131 = vcmask 130048
  %v133 = vsel %vm131, %v124, 0
  %135 = vmatprep.subr.bf16.mxu0 0
  %136 = vmatpush1.bf16.msra.mxu0 %v129
  %137 = vmatprep.subr.bf16.mxu0 0
  %138 = vmatpush1.bf16.msra.mxu0 0
  %139 = vmatprep.subr.bf16.mxu0 0
  %140 = vmatpush1.bf16.msra.mxu0 0
  %141 = vmatprep.subr.bf16.mxu0 0
  %142 = vmatpush1.bf16.msra.mxu0 0
  %143 = vmatprep.subr.bf16.mxu0 0
  %144 = vmatpush1.bf16.msra.mxu0 0
  %145 = vmatprep.subr.bf16.mxu0 0
  %146 = vmatpush1.bf16.msra.mxu0 0
  %147 = vmatprep.subr.bf16.mxu0 0
  %148 = vmatpush1.bf16.msra.mxu0 0
  %149 = vmatprep.subr.bf16.mxu0 0
  %150 = vmatpush1.bf16.msra.mxu0 0
  %151 = vmatprep.subr.bf16.mxu0 0
  %152 = vmatpush1.bf16.msra.mxu0 0
  %153 = vmatprep.subr.bf16.mxu0 0
  %154 = vmatpush1.bf16.msra.mxu0 0
  %155 = vmatprep.subr.bf16.mxu0 0
  %156 = vmatpush1.bf16.msra.mxu0 0
  %157 = vmatprep.subr.bf16.mxu0 0
  %158 = vmatpush1.bf16.msra.mxu0 0
  %159 = vmatprep.subr.bf16.mxu0 0
  %160 = vmatpush1.bf16.msra.mxu0 0
  %161 = vmatprep.subr.bf16.mxu0 0
  %162 = vmatpush1.bf16.msra.mxu0 0
  %163 = vmatprep.subr.bf16.mxu0 0
  %164 = vmatpush1.bf16.msra.mxu0 0
  %165 = vmatprep.subr.bf16.mxu0 0
  %166 = vmatpush1.bf16.msra.mxu0 0
  %167 = vmatprep.mubr.bf16.mxu0 0
  %168 = vmatmul.mubr.bf16.gmra.mrb[0].mxu0 %v133
  %v169 = vpop.f32.mrb[0].mxu0
  %v170 = vadd.f32 0.0, %v169
  %v171 = vpop.f32.mrb[0].mxu0
  %v172 = vpop.f32.mrb[0].mxu0
  %v173 = vadd.f32 0.0, %v172
  %v174 = vpop.f32.mrb[0].mxu0
  %175 = vdwg.mxu0
  %v176 = vpack.c.bf16 %v173, %v170
  %v179 = vunpack.c.l.b16 %v30
  %v180 = vunpack.c.l.b16 %v31
  %v181 = vpack.c.b16 %v180, %v179
  %v183 = vsel %vm131, %v181, 0
  %185 = vmatprep.subr.bf16.mxu0 0
  %186 = vmatpush1.bf16.msra.mxu0 %v176
  %187 = vmatprep.subr.bf16.mxu0 0
  %188 = vmatpush1.bf16.msra.mxu0 0
  %189 = vmatprep.subr.bf16.mxu0 0
  %190 = vmatpush1.bf16.msra.mxu0 0
  %191 = vmatprep.subr.bf16.mxu0 0
  %192 = vmatpush1.bf16.msra.mxu0 0
  %193 = vmatprep.subr.bf16.mxu0 0
  %194 = vmatpush1.bf16.msra.mxu0 0
  %195 = vmatprep.subr.bf16.mxu0 0
  %196 = vmatpush1.bf16.msra.mxu0 0
  %197 = vmatprep.subr.bf16.mxu0 0
  %198 = vmatpush1.bf16.msra.mxu0 0
  %199 = vmatprep.subr.bf16.mxu0 0
  %200 = vmatpush1.bf16.msra.mxu0 0
  %201 = vmatprep.subr.bf16.mxu0 0
  %202 = vmatpush1.bf16.msra.mxu0 0
  %203 = vmatprep.subr.bf16.mxu0 0
  %204 = vmatpush1.bf16.msra.mxu0 0
  %205 = vmatprep.subr.bf16.mxu0 0
  %206 = vmatpush1.bf16.msra.mxu0 0
  %207 = vmatprep.subr.bf16.mxu0 0
  %208 = vmatpush1.bf16.msra.mxu0 0
  %209 = vmatprep.subr.bf16.mxu0 0
  %210 = vmatpush1.bf16.msra.mxu0 0
  %211 = vmatprep.subr.bf16.mxu0 0
  %212 = vmatpush1.bf16.msra.mxu0 0
  %213 = vmatprep.subr.bf16.mxu0 0
  %214 = vmatpush1.bf16.msra.mxu0 0
  %215 = vmatprep.subr.bf16.mxu0 0
  %216 = vmatpush1.bf16.msra.mxu0 0
  %217 = vmatprep.mubr.bf16.mxu0 0
  %218 = vmatmul.mubr.bf16.gmra.mrb[0].mxu0 %v183
  %v219 = vpop.f32.mrb[0].mxu0
  %v220 = vadd.f32 0.0, %v219
  %v221 = vpop.f32.mrb[0].mxu0
  %v222 = vpop.f32.mrb[0].mxu0
  %v223 = vadd.f32 0.0, %v222
  %v224 = vpop.f32.mrb[0].mxu0
  %225 = vdwg.mxu0
  %v226 = vld [vmem:[%s7] sm:$0x1]
  %v228 = vlaneseq
  %v229 = vshrl.u32 %v228, 7
  %v230 = vsub.s32 0, %v229
  %v231 = vrot.slane %v226, %v230
  %v233 = vmul.f32 %v220, %v231
  %v234 = vmul.f32 %v223, %v231
  %v235 = vld [vmem:[%s7 + $0x1] sm:$0x1]
  %v237 = vlaneseq
  %v238 = vshrl.u32 %v237, 7
  %v239 = vsub.s32 0, %v238
  %v240 = vrot.slane %v235, %v239
  %v242 = vadd.f32 %v233, %v240
  %v243 = vadd.f32 %v234, %v240
  %v244 = vmax.f32 %v242, 0.0
  %v245 = vmax.f32 %v243, 0.0
  %v246 = vpack.c.bf16 %v245, %v244
  %v251 = vunpack.c.l.b16 %v34
  %v252 = vunpack.c.l.b16 %v35
  %v253 = vunpack.c.l.b16 %v36
  %v254 = vunpack.c.l.b16 %v37
  %v255 = vpack.c.b16 %v252, %v251
  %v256 = vpack.c.b16 %v254, %v253
  %vm259 = vcmask 261120
  %v261 = vsel %vm259, %v246, 0
  %263 = vmatprep.subr.bf16.mxu0 0
  %264 = vmatpush1.bf16.msra.mxu0 %v255
  %265 = vmatprep.subr.bf16.mxu0 0
  %266 = vmatpush1.bf16.msra.mxu0 %v256
  %267 = vmatprep.subr.bf16.mxu0 0
  %268 = vmatpush1.bf16.msra.mxu0 0
  %269 = vmatprep.subr.bf16.mxu0 0
  %270 = vmatpush1.bf16.msra.mxu0 0
  %271 = vmatprep.subr.bf16.mxu0 0
  %272 = vmatpush1.bf16.msra.mxu0 0
  %273 = vmatprep.subr.bf16.mxu0 0
  %274 = vmatpush1.bf16.msra.mxu0 0
  %275 = vmatprep.subr.bf16.mxu0 0
  %276 = vmatpush1.bf16.msra.mxu0 0
  %277 = vmatprep.subr.bf16.mxu0 0
  %278 = vmatpush1.bf16.msra.mxu0 0
  %279 = vmatprep.subr.bf16.mxu0 0
  %280 = vmatpush1.bf16.msra.mxu0 0
  %281 = vmatprep.subr.bf16.mxu0 0
  %282 = vmatpush1.bf16.msra.mxu0 0
  %283 = vmatprep.subr.bf16.mxu0 0
  %284 = vmatpush1.bf16.msra.mxu0 0
  %285 = vmatprep.subr.bf16.mxu0 0
  %286 = vmatpush1.bf16.msra.mxu0 0
  %287 = vmatprep.subr.bf16.mxu0 0
  %288 = vmatpush1.bf16.msra.mxu0 0
  %289 = vmatprep.subr.bf16.mxu0 0
  %290 = vmatpush1.bf16.msra.mxu0 0
  %291 = vmatprep.subr.bf16.mxu0 0
  %292 = vmatpush1.bf16.msra.mxu0 0
  %293 = vmatprep.subr.bf16.mxu0 0
  %294 = vmatpush1.bf16.msra.mxu0 0
  %295 = vmatprep.mubr.bf16.mxu0 0
  %296 = vmatmul.mubr.bf16.gmra.mrb[0].mxu0 %v261
  %v297 = vpop.f32.mrb[0].mxu0
  %v298 = vadd.f32 0.0, %v297
  %v299 = vpop.f32.mrb[0].mxu0
  %v300 = vpop.f32.mrb[0].mxu0
  %v301 = vadd.f32 0.0, %v300
  %v302 = vpop.f32.mrb[0].mxu0
  %303 = vdwg.mxu0
  %v304 = vpack.c.bf16 %v301, %v298
  %305 = vmatprep.subr.bf16.mxu0 0
  %306 = vmatpush1.bf16.msra.mxu0 %v304
  %307 = vmatprep.subr.bf16.mxu0 0
  %308 = vmatpush1.bf16.msra.mxu0 0
  %309 = vmatprep.subr.bf16.mxu0 0
  %310 = vmatpush1.bf16.msra.mxu0 0
  %311 = vmatprep.subr.bf16.mxu0 0
  %312 = vmatpush1.bf16.msra.mxu0 0
  %313 = vmatprep.subr.bf16.mxu0 0
  %314 = vmatpush1.bf16.msra.mxu0 0
  %315 = vmatprep.subr.bf16.mxu0 0
  %316 = vmatpush1.bf16.msra.mxu0 0
  %317 = vmatprep.subr.bf16.mxu0 0
  %318 = vmatpush1.bf16.msra.mxu0 0
  %319 = vmatprep.subr.bf16.mxu0 0
  %320 = vmatpush1.bf16.msra.mxu0 0
  %321 = vmatprep.subr.bf16.mxu0 0
  %322 = vmatpush1.bf16.msra.mxu0 0
  %323 = vmatprep.subr.bf16.mxu0 0
  %324 = vmatpush1.bf16.msra.mxu0 0
  %325 = vmatprep.subr.bf16.mxu0 0
  %326 = vmatpush1.bf16.msra.mxu0 0
  %327 = vmatprep.subr.bf16.mxu0 0
  %328 = vmatpush1.bf16.msra.mxu0 0
  %329 = vmatprep.subr.bf16.mxu0 0
  %330 = vmatpush1.bf16.msra.mxu0 0
  %331 = vmatprep.subr.bf16.mxu0 0
  %332 = vmatpush1.bf16.msra.mxu0 0
  %333 = vmatprep.subr.bf16.mxu0 0
  %334 = vmatpush1.bf16.msra.mxu0 0
  %335 = vmatprep.subr.bf16.mxu0 0
  %336 = vmatpush1.bf16.msra.mxu0 0
  %337 = vmatprep.mubr.bf16.mxu0 0
  %338 = vmatmul.mubr.bf16.gmra.mrb[0].mxu0 %v183
  %v339 = vpop.f32.mrb[0].mxu0
  %v340 = vadd.f32 0.0, %v339
  %v341 = vpop.f32.mrb[0].mxu0
  %v342 = vpop.f32.mrb[0].mxu0
  %v343 = vadd.f32 0.0, %v342
  %v344 = vpop.f32.mrb[0].mxu0
  %345 = vdwg.mxu0
  %v346 = vld [vmem:[%s7 + $0x2] sm:$0x1]
  %v348 = vlaneseq
  %v349 = vshrl.u32 %v348, 7
  %v350 = vsub.s32 0, %v349
  %v351 = vrot.slane %v346, %v350
  %v353 = vmul.f32 %v340, %v351
  %v354 = vmul.f32 %v343, %v351
  %v355 = vld [vmem:[%s7 + $0x3] sm:$0x1]
  %v357 = vlaneseq
  %v358 = vshrl.u32 %v357, 7
  %v359 = vsub.s32 0, %v358
  %v360 = vrot.slane %v355, %v359
  %v362 = vadd.f32 %v353, %v360
  %v363 = vadd.f32 %v354, %v360
  %v364 = vmax.f32 %v362, 0.0
  %v365 = vmax.f32 %v363, 0.0
  %v366 = vld [vmem:[%s2] sm:$0x1]
  %v367 = vpack.c.bf16 %v365, %v364
  %v369 = vsel %vm131, %v366, 0
  %371 = vmatprep.subr.bf16.mxu0 0
  %372 = vmatpush1.bf16.msra.mxu0 %v367
  %373 = vmatprep.subr.bf16.mxu0 0
  %374 = vmatpush1.bf16.msra.mxu0 0
  %375 = vmatprep.subr.bf16.mxu0 0
  %376 = vmatpush1.bf16.msra.mxu0 0
  %377 = vmatprep.subr.bf16.mxu0 0
  %378 = vmatpush1.bf16.msra.mxu0 0
  %379 = vmatprep.subr.bf16.mxu0 0
  %380 = vmatpush1.bf16.msra.mxu0 0
  %381 = vmatprep.subr.bf16.mxu0 0
  %382 = vmatpush1.bf16.msra.mxu0 0
  %383 = vmatprep.subr.bf16.mxu0 0
  %384 = vmatpush1.bf16.msra.mxu0 0
  %385 = vmatprep.subr.bf16.mxu0 0
  %386 = vmatpush1.bf16.msra.mxu0 0
  %387 = vmatprep.subr.bf16.mxu0 0
  %388 = vmatpush1.bf16.msra.mxu0 0
  %389 = vmatprep.subr.bf16.mxu0 0
  %390 = vmatpush1.bf16.msra.mxu0 0
  %391 = vmatprep.subr.bf16.mxu0 0
  %392 = vmatpush1.bf16.msra.mxu0 0
  %393 = vmatprep.subr.bf16.mxu0 0
  %394 = vmatpush1.bf16.msra.mxu0 0
  %395 = vmatprep.subr.bf16.mxu0 0
  %396 = vmatpush1.bf16.msra.mxu0 0
  %397 = vmatprep.subr.bf16.mxu0 0
  %398 = vmatpush1.bf16.msra.mxu0 0
  %399 = vmatprep.subr.bf16.mxu0 0
  %400 = vmatpush1.bf16.msra.mxu0 0
  %401 = vmatprep.subr.bf16.mxu0 0
  %402 = vmatpush1.bf16.msra.mxu0 0
  %403 = vmatprep.mubr.bf16.mxu0 0
  %404 = vmatmul.mubr.bf16.gmra.mrb[0].mxu0 %v369
  %v405 = vpop.f32.mrb[0].mxu0
  %v406 = vadd.f32 0.0, %v405
  %v407 = vpop.f32.mrb[0].mxu0
  %v408 = vpop.f32.mrb[0].mxu0
  %v409 = vpop.f32.mrb[0].mxu0
  %410 = vdwg.mxu0
  %v411 = vld [vmem:[%s3] sm:$0x3]
  %v412 = vpack.c.bf16 %v411, %v411
  %v413 = vld [vmem:[%s7 + $0x4] sm:$0x3]
  %v415 = vlaneseq
  %v416 = vshrl.u32 %v415, 7
  %v417 = vsub.s32 0, %v416
  %v418 = vrot.slane %v413, %v417
  %v419 = vlaneseq
  %v420 = vshrl.u32 %v419, 7
  %v421 = vsub.s32 1, %v420
  %v422 = vrot.slane %v413, %v421
  %v441 = vunpack.c.l.b16 %v38
  %v442 = vunpack.c.h.b16 %v38
  %v443 = vunpack.c.l.b16 %v39
  %v444 = vunpack.c.h.b16 %v39
  %v445 = vunpack.c.l.b16 %v40
  %v446 = vunpack.c.h.b16 %v40
  %v447 = vunpack.c.l.b16 %v41
  %v448 = vunpack.c.h.b16 %v41
  %v449 = vunpack.c.l.b16 %v42
  %v450 = vunpack.c.h.b16 %v42
  %v451 = vunpack.c.l.b16 %v43
  %v452 = vunpack.c.h.b16 %v43
  %v453 = vunpack.c.l.b16 %v44
  %v454 = vunpack.c.h.b16 %v44
  %v455 = vunpack.c.l.b16 %v45
  %v456 = vunpack.c.h.b16 %v45
  %v457 = vunpack.c.l.b16 %v46
  %v458 = vunpack.c.h.b16 %v46
  %v459 = vunpack.c.l.b16 %v47
  %v460 = vunpack.c.h.b16 %v47
  %v461 = vunpack.c.l.b16 %v48
  %v462 = vunpack.c.h.b16 %v48
  %v463 = vunpack.c.l.b16 %v49
  %v464 = vunpack.c.h.b16 %v49
  %v465 = vunpack.c.l.b16 %v50
  %v466 = vunpack.c.h.b16 %v50
  %v467 = vunpack.c.l.b16 %v51
  %v468 = vunpack.c.h.b16 %v51
  %v469 = vunpack.c.l.b16 %v52
  %v470 = vunpack.c.h.b16 %v52
  %v471 = vunpack.c.l.b16 %v53
  %v472 = vunpack.c.h.b16 %v53
  %v473 = vpack.c.b16 %v443, %v441
  %v474 = vpack.c.b16 %v444, %v442
  %v475 = vpack.c.b16 %v447, %v445
  %v476 = vpack.c.b16 %v448, %v446
  %v477 = vpack.c.b16 %v451, %v449
  %v478 = vpack.c.b16 %v452, %v450
  %v479 = vpack.c.b16 %v455, %v453
  %v480 = vpack.c.b16 %v456, %v454
  %v481 = vpack.c.b16 %v459, %v457
  %v482 = vpack.c.b16 %v460, %v458
  %v483 = vpack.c.b16 %v463, %v461
  %v484 = vpack.c.b16 %v464, %v462
  %v485 = vpack.c.b16 %v467, %v465
  %v486 = vpack.c.b16 %v468, %v466
  %v487 = vpack.c.b16 %v471, %v469
  %v488 = vpack.c.b16 %v472, %v470
  %505 = vmatprep.subr.bf16.mxu0 %v474
  %506 = vmatpush1.bf16.msra.mxu0 %v473
  %507 = vmatprep.subr.bf16.mxu0 %v476
  %508 = vmatpush1.bf16.msra.mxu0 %v475
  %509 = vmatprep.subr.bf16.mxu0 %v478
  %510 = vmatpush1.bf16.msra.mxu0 %v477
  %511 = vmatprep.subr.bf16.mxu0 %v480
  %512 = vmatpush1.bf16.msra.mxu0 %v479
  %513 = vmatprep.subr.bf16.mxu0 %v482
  %514 = vmatpush1.bf16.msra.mxu0 %v481
  %515 = vmatprep.subr.bf16.mxu0 %v484
  %516 = vmatpush1.bf16.msra.mxu0 %v483
  %517 = vmatprep.subr.bf16.mxu0 %v486
  %518 = vmatpush1.bf16.msra.mxu0 %v485
  %519 = vmatprep.subr.bf16.mxu0 %v488
  %520 = vmatpush1.bf16.msra.mxu0 %v487
  %521 = vmatprep.subr.bf16.mxu0 0
  %522 = vmatpush1.bf16.msra.mxu0 0
  %523 = vmatprep.subr.bf16.mxu0 0
  %524 = vmatpush1.bf16.msra.mxu0 0
  %525 = vmatprep.subr.bf16.mxu0 0
  %526 = vmatpush1.bf16.msra.mxu0 0
  %527 = vmatprep.subr.bf16.mxu0 0
  %528 = vmatpush1.bf16.msra.mxu0 0
  %529 = vmatprep.subr.bf16.mxu0 0
  %530 = vmatpush1.bf16.msra.mxu0 0
  %531 = vmatprep.subr.bf16.mxu0 0
  %532 = vmatpush1.bf16.msra.mxu0 0
  %533 = vmatprep.subr.bf16.mxu0 0
  %534 = vmatpush1.bf16.msra.mxu0 0
  %535 = vmatprep.subr.bf16.mxu0 0
  %536 = vmatpush1.bf16.msra.mxu0 0
  %537 = vmatprep.mubr.bf16.mxu0 0
  %538 = vmatmul.mubr.bf16.gmra.mrb[0].mxu0 %v412
  %v539 = vpop.f32.mrb[0].mxu0
  %v540 = vadd.f32 %v418, %v539
  %v541 = vpop.f32.mrb[0].mxu0
  %v542 = vadd.f32 %v422, %v541
  %v543 = vpop.f32.mrb[0].mxu0
  %v544 = vpop.f32.mrb[0].mxu0
  %545 = vdwg.mxu0
  %v546 = vmax.f32 %v540, 0.0
  %v547 = vmax.f32 %v542, 0.0
  %v548 = vpack.c.bf16 %v546, %v546
  %v549 = vpack.c.bf16 %v547, %v547
  %v550 = vld [vmem:[%s7 + $0x6] sm:$0x1]
  %v552 = vlaneseq
  %v553 = vshrl.u32 %v552, 7
  %v554 = vsub.s32 0, %v553
  %v555 = vrot.slane %v550, %v554
  %v589 = vunpack.c.l.b16 %v66
  %v590 = vunpack.c.l.b16 %v67
  %v591 = vunpack.c.l.b16 %v68
  %v592 = vunpack.c.l.b16 %v69
  %v593 = vunpack.c.l.b16 %v70
  %v594 = vunpack.c.l.b16 %v71
  %v595 = vunpack.c.l.b16 %v72
  %v596 = vunpack.c.l.b16 %v73
  %v597 = vunpack.c.l.b16 %v74
  %v598 = vunpack.c.l.b16 %v75
  %v599 = vunpack.c.l.b16 %v76
  %v600 = vunpack.c.l.b16 %v77
  %v601 = vunpack.c.l.b16 %v78
  %v602 = vunpack.c.l.b16 %v79
  %v603 = vunpack.c.l.b16 %v80
  %v604 = vunpack.c.l.b16 %v81
  %v605 = vunpack.c.l.b16 %v82
  %v606 = vunpack.c.l.b16 %v83
  %v607 = vunpack.c.l.b16 %v84
  %v608 = vunpack.c.l.b16 %v85
  %v609 = vunpack.c.l.b16 %v86
  %v610 = vunpack.c.l.b16 %v87
  %v611 = vunpack.c.l.b16 %v88
  %v612 = vunpack.c.l.b16 %v89
  %v613 = vunpack.c.l.b16 %v90
  %v614 = vunpack.c.l.b16 %v91
  %v615 = vunpack.c.l.b16 %v92
  %v616 = vunpack.c.l.b16 %v93
  %v617 = vunpack.c.l.b16 %v94
  %v618 = vunpack.c.l.b16 %v95
  %v619 = vunpack.c.l.b16 %v96
  %v620 = vunpack.c.l.b16 %v97
  %v621 = vpack.c.b16 %v590, %v589
  %v622 = vpack.c.b16 %v592, %v591
  %v623 = vpack.c.b16 %v594, %v593
  %v624 = vpack.c.b16 %v596, %v595
  %v625 = vpack.c.b16 %v598, %v597
  %v626 = vpack.c.b16 %v600, %v599
  %v627 = vpack.c.b16 %v602, %v601
  %v628 = vpack.c.b16 %v604, %v603
  %v629 = vpack.c.b16 %v606, %v605
  %v630 = vpack.c.b16 %v608, %v607
  %v631 = vpack.c.b16 %v610, %v609
  %v632 = vpack.c.b16 %v612, %v611
  %v633 = vpack.c.b16 %v614, %v613
  %v634 = vpack.c.b16 %v616, %v615
  %v635 = vpack.c.b16 %v618, %v617
  %v636 = vpack.c.b16 %v620, %v619
  %653 = vmatprep.subr.bf16.mxu0 0
  %654 = vmatpush1.bf16.msra.mxu0 %v621
  %655 = vmatprep.subr.bf16.mxu0 0
  %656 = vmatpush1.bf16.msra.mxu0 %v622
  %657 = vmatprep.subr.bf16.mxu0 0
  %658 = vmatpush1.bf16.msra.mxu0 %v623
  %659 = vmatprep.subr.bf16.mxu0 0
  %660 = vmatpush1.bf16.msra.mxu0 %v624
  %661 = vmatprep.subr.bf16.mxu0 0
  %662 = vmatpush1.bf16.msra.mxu0 %v625
  %663 = vmatprep.subr.bf16.mxu0 0
  %664 = vmatpush1.bf16.msra.mxu0 %v626
  %665 = vmatprep.subr.bf16.mxu0 0
  %666 = vmatpush1.bf16.msra.mxu0 %v627
  %667 = vmatprep.subr.bf16.mxu0 0
  %668 = vmatpush1.bf16.msra.mxu0 %v628
  %669 = vmatprep.subr.bf16.mxu0 0
  %670 = vmatpush1.bf16.msra.mxu0 %v629
  %671 = vmatprep.subr.bf16.mxu0 0
  %672 = vmatpush1.bf16.msra.mxu0 %v630
  %673 = vmatprep.subr.bf16.mxu0 0
  %674 = vmatpush1.bf16.msra.mxu0 %v631
  %675 = vmatprep.subr.bf16.mxu0 0
  %676 = vmatpush1.bf16.msra.mxu0 %v632
  %677 = vmatprep.subr.bf16.mxu0 0
  %678 = vmatpush1.bf16.msra.mxu0 %v633
  %679 = vmatprep.subr.bf16.mxu0 0
  %680 = vmatpush1.bf16.msra.mxu0 %v634
  %681 = vmatprep.subr.bf16.mxu0 0
  %682 = vmatpush1.bf16.msra.mxu0 %v635
  %683 = vmatprep.subr.bf16.mxu0 0
  %684 = vmatpush1.bf16.msra.mxu0 %v636
  %685 = vmatprep.mubr.bf16.mxu0 %v549
  %686 = vmatmul.mubr.bf16.gmra.mrb[0].mxu0 %v548
  %v687 = vpop.f32.mrb[0].mxu0
  %v688 = vadd.f32 %v555, %v687
  %v689 = vpop.f32.mrb[0].mxu0
  %v690 = vpop.f32.mrb[0].mxu0
  %v691 = vpop.f32.mrb[0].mxu0
  %692 = vdwg.mxu0
  %v693 = vmax.f32 %v688, 0.0
  %vm694 = vcmask 254976
  %695 = vst.msk [vmem:[#allocation2] sm:$0x3] %vm694, %v406
  %697 = vrot.lane.b32.xlu0 %v693, 32
  %v698 = vpop.permute.xlu0 %697
  %vm700 = vcmask 779520
  %701 = vst.msk [vmem:[#allocation2] sm:$0x3] %vm700, %v698
  %v702 = vld [vmem:[#allocation2] sm:$0x3]
  %v703 = vpack.c.bf16 %v702, %v702
  %v704 = vld [vmem:[%s7 + $0x7] sm:$0x1]
  %v706 = vlaneseq
  %v707 = vshrl.u32 %v706, 7
  %v708 = vsub.s32 0, %v707
  %v709 = vrot.slane %v704, %v708
  %v723 = vunpack.c.l.b16 %v54
  %v724 = vunpack.c.l.b16 %v55
  %v725 = vunpack.c.l.b16 %v56
  %v726 = vunpack.c.l.b16 %v57
  %v727 = vunpack.c.l.b16 %v58
  %v728 = vunpack.c.l.b16 %v59
  %v729 = vunpack.c.l.b16 %v60
  %v730 = vunpack.c.l.b16 %v61
  %v731 = vunpack.c.l.b16 %v62
  %v732 = vunpack.c.l.b16 %v63
  %v733 = vunpack.c.l.b16 %v64
  %v734 = vunpack.c.l.b16 %v65
  %v735 = vpack.c.b16 %v724, %v723
  %v736 = vpack.c.b16 %v726, %v725
  %v737 = vpack.c.b16 %v728, %v727
  %v738 = vpack.c.b16 %v730, %v729
  %v739 = vpack.c.b16 %v732, %v731
  %v740 = vpack.c.b16 %v734, %v733
  %vm747 = vcmask 785408
  %v749 = vsel %vm747, %v703, 0
  %751 = vmatprep.subr.bf16.mxu0 0
  %752 = vmatpush1.bf16.msra.mxu0 %v735
  %753 = vmatprep.subr.bf16.mxu0 0
  %754 = vmatpush1.bf16.msra.mxu0 %v736
  %755 = vmatprep.subr.bf16.mxu0 0
  %756 = vmatpush1.bf16.msra.mxu0 %v737
  %757 = vmatprep.subr.bf16.mxu0 0
  %758 = vmatpush1.bf16.msra.mxu0 %v738
  %759 = vmatprep.subr.bf16.mxu0 0
  %760 = vmatpush1.bf16.msra.mxu0 %v739
  %761 = vmatprep.subr.bf16.mxu0 0
  %762 = vmatpush1.bf16.msra.mxu0 %v740
  %763 = vmatprep.subr.bf16.mxu0 0
  %764 = vmatpush1.bf16.msra.mxu0 0
  %765 = vmatprep.subr.bf16.mxu0 0
  %766 = vmatpush1.bf16.msra.mxu0 0
  %767 = vmatprep.subr.bf16.mxu0 0
  %768 = vmatpush1.bf16.msra.mxu0 0
  %769 = vmatprep.subr.bf16.mxu0 0
  %770 = vmatpush1.bf16.msra.mxu0 0
  %771 = vmatprep.subr.bf16.mxu0 0
  %772 = vmatpush1.bf16.msra.mxu0 0
  %773 = vmatprep.subr.bf16.mxu0 0
  %774 = vmatpush1.bf16.msra.mxu0 0
  %775 = vmatprep.subr.bf16.mxu0 0
  %776 = vmatpush1.bf16.msra.mxu0 0
  %777 = vmatprep.subr.bf16.mxu0 0
  %778 = vmatpush1.bf16.msra.mxu0 0
  %779 = vmatprep.subr.bf16.mxu0 0
  %780 = vmatpush1.bf16.msra.mxu0 0
  %781 = vmatprep.subr.bf16.mxu0 0
  %782 = vmatpush1.bf16.msra.mxu0 0
  %783 = vmatprep.mubr.bf16.mxu0 0
  %784 = vmatmul.mubr.bf16.gmra.mrb[0].mxu0 %v749
  %v785 = vpop.f32.mrb[0].mxu0
  %v786 = vadd.f32 %v709, %v785
  %v787 = vpop.f32.mrb[0].mxu0
  %v788 = vpop.f32.mrb[0].mxu0
  %v789 = vpop.f32.mrb[0].mxu0
  %790 = vdwg.mxu0
  %v791 = vmax.f32 %v786, 0.0
  %v792 = vpack.c.bf16 %v791, %v791
  %v793 = vld [vmem:[%s7 + $0x8] sm:$0x1]
  %v795 = vlaneseq
  %v796 = vshrl.u32 %v795, 7
  %v797 = vsub.s32 0, %v796
  %v798 = vrot.slane %v793, %v797
  %v816 = vunpack.c.l.b16 %v98
  %v817 = vunpack.c.l.b16 %v99
  %v818 = vunpack.c.l.b16 %v100
  %v819 = vunpack.c.l.b16 %v101
  %v820 = vunpack.c.l.b16 %v102
  %v821 = vunpack.c.l.b16 %v103
  %v822 = vunpack.c.l.b16 %v104
  %v823 = vunpack.c.l.b16 %v105
  %v824 = vunpack.c.l.b16 %v106
  %v825 = vunpack.c.l.b16 %v107
  %v826 = vunpack.c.l.b16 %v108
  %v827 = vunpack.c.l.b16 %v109
  %v828 = vunpack.c.l.b16 %v110
  %v829 = vunpack.c.l.b16 %v111
  %v830 = vunpack.c.l.b16 %v112
  %v831 = vunpack.c.l.b16 %v113
  %v832 = vpack.c.b16 %v817, %v816
  %v833 = vpack.c.b16 %v819, %v818
  %v834 = vpack.c.b16 %v821, %v820
  %v835 = vpack.c.b16 %v823, %v822
  %v836 = vpack.c.b16 %v825, %v824
  %v837 = vpack.c.b16 %v827, %v826
  %v838 = vpack.c.b16 %v829, %v828
  %v839 = vpack.c.b16 %v831, %v830
  %848 = vmatprep.subr.bf16.mxu0 0
  %849 = vmatpush1.bf16.msra.mxu0 %v832
  %850 = vmatprep.subr.bf16.mxu0 0
  %851 = vmatpush1.bf16.msra.mxu0 %v833
  %852 = vmatprep.subr.bf16.mxu0 0
  %853 = vmatpush1.bf16.msra.mxu0 %v834
  %854 = vmatprep.subr.bf16.mxu0 0
  %855 = vmatpush1.bf16.msra.mxu0 %v835
  %856 = vmatprep.subr.bf16.mxu0 0
  %857 = vmatpush1.bf16.msra.mxu0 %v836
  %858 = vmatprep.subr.bf16.mxu0 0
  %859 = vmatpush1.bf16.msra.mxu0 %v837
  %860 = vmatprep.subr.bf16.mxu0 0
  %861 = vmatpush1.bf16.msra.mxu0 %v838
  %862 = vmatprep.subr.bf16.mxu0 0
  %863 = vmatpush1.bf16.msra.mxu0 %v839
  %864 = vmatprep.subr.bf16.mxu0 0
  %865 = vmatpush1.bf16.msra.mxu0 0
  %866 = vmatprep.subr.bf16.mxu0 0
  %867 = vmatpush1.bf16.msra.mxu0 0
  %868 = vmatprep.subr.bf16.mxu0 0
  %869 = vmatpush1.bf16.msra.mxu0 0
  %870 = vmatprep.subr.bf16.mxu0 0
  %871 = vmatpush1.bf16.msra.mxu0 0
  %872 = vmatprep.subr.bf16.mxu0 0
  %873 = vmatpush1.bf16.msra.mxu0 0
  %874 = vmatprep.subr.bf16.mxu0 0
  %875 = vmatpush1.bf16.msra.mxu0 0
  %876 = vmatprep.subr.bf16.mxu0 0
  %877 = vmatpush1.bf16.msra.mxu0 0
  %878 = vmatprep.subr.bf16.mxu0 0
  %879 = vmatpush1.bf16.msra.mxu0 0
  %880 = vmatprep.mubr.bf16.mxu0 0
  %881 = vmatmul.mubr.bf16.gmra.mrb[0].mxu0 %v792
  %v882 = vpop.f32.mrb[0].mxu0
  %v883 = vadd.f32 %v798, %v882
  %v884 = vpop.f32.mrb[0].mxu0
  %v885 = vpop.f32.mrb[0].mxu0
  %v886 = vpop.f32.mrb[0].mxu0
  %887 = vdwg.mxu0
  %v888 = vmax.f32 %v883, 0.0
  %v889 = vpack.c.bf16 %v888, %v888
  %v890 = vld [vmem:[%s7 + $0x9] sm:$0x1]
  %v892 = vlaneseq
  %v893 = vshrl.u32 %v892, 7
  %v894 = vsub.s32 0, %v893
  %v895 = vrot.slane %v890, %v894
  %v905 = vunpack.c.l.b16 %v114
  %v906 = vunpack.c.l.b16 %v115
  %v907 = vunpack.c.l.b16 %v116
  %v908 = vunpack.c.l.b16 %v117
  %v909 = vunpack.c.l.b16 %v118
  %v910 = vunpack.c.l.b16 %v119
  %v911 = vunpack.c.l.b16 %v120
  %v912 = vunpack.c.l.b16 %v121
  %v913 = vpack.c.b16 %v906, %v905
  %v914 = vpack.c.b16 %v908, %v907
  %v915 = vpack.c.b16 %v910, %v909
  %v916 = vpack.c.b16 %v912, %v911
  %vm921 = vcmask 523264
  %v923 = vsel %vm921, %v889, 0
  %925 = vmatprep.subr.bf16.mxu0 0
  %926 = vmatpush1.bf16.msra.mxu0 %v913
  %927 = vmatprep.subr.bf16.mxu0 0
  %928 = vmatpush1.bf16.msra.mxu0 %v914
  %929 = vmatprep.subr.bf16.mxu0 0
  %930 = vmatpush1.bf16.msra.mxu0 %v915
  %931 = vmatprep.subr.bf16.mxu0 0
  %932 = vmatpush1.bf16.msra.mxu0 %v916
  %933 = vmatprep.subr.bf16.mxu0 0
  %934 = vmatpush1.bf16.msra.mxu0 0
  %935 = vmatprep.subr.bf16.mxu0 0
  %936 = vmatpush1.bf16.msra.mxu0 0
  %937 = vmatprep.subr.bf16.mxu0 0
  %938 = vmatpush1.bf16.msra.mxu0 0
  %939 = vmatprep.subr.bf16.mxu0 0
  %940 = vmatpush1.bf16.msra.mxu0 0
  %941 = vmatprep.subr.bf16.mxu0 0
  %942 = vmatpush1.bf16.msra.mxu0 0
  %943 = vmatprep.subr.bf16.mxu0 0
  %944 = vmatpush1.bf16.msra.mxu0 0
  %945 = vmatprep.subr.bf16.mxu0 0
  %946 = vmatpush1.bf16.msra.mxu0 0
  %947 = vmatprep.subr.bf16.mxu0 0
  %948 = vmatpush1.bf16.msra.mxu0 0
  %949 = vmatprep.subr.bf16.mxu0 0
  %950 = vmatpush1.bf16.msra.mxu0 0
  %951 = vmatprep.subr.bf16.mxu0 0
  %952 = vmatpush1.bf16.msra.mxu0 0
  %953 = vmatprep.subr.bf16.mxu0 0
  %954 = vmatpush1.bf16.msra.mxu0 0
  %955 = vmatprep.subr.bf16.mxu0 0
  %956 = vmatpush1.bf16.msra.mxu0 0
  %957 = vmatprep.mubr.bf16.mxu0 0
  %958 = vmatmul.mubr.bf16.gmra.mrb[0].mxu0 %v923
  %v959 = vpop.f32.mrb[0].mxu0
  %v960 = vadd.f32 %v895, %v959
  %v961 = vpop.f32.mrb[0].mxu0
  %v962 = vpop.f32.mrb[0].mxu0
  %v963 = vpop.f32.mrb[0].mxu0
  %964 = vdwg.mxu0
  %v965 = vmax.f32 %v960, 0.0
  %v966 = vld [vmem:[%s7 + $0xa] sm:$0x1]
  %v968 = vlaneseq
  %v969 = vshrl.u32 %v968, 7
  %v970 = vsub.s32 0, %v969
  %v971 = vrot.slane %v966, %v970
  %v973 = vmul.f32 %v965, %v971
  %v974 = vsel %vm694, %v973, 0.0
  %975 = vadd.xlane.f32.xlu0 %v974
  %v976 = vpop.xlane.xlu0 %975
  %v977 = vld [vmem:[%s7 + $0xb] sm:$0x1]
  %v979 = vlaneseq
  %v980 = vshrl.u32 %v979, 7
  %v981 = vsub.s32 0, %v980
  %v982 = vrot.slane %v977, %v981
  %v984 = vadd.f32 %v976, %v982
  %v985 = vxor.u32 %v984, 2147483648
  %v986 = vmul.f32 %v985, 1.442695
  %v987 = vpow.pop %v986
  %v988 = vadd.f32 %v987, 1.0
  %v989 = vrcp.pop %v988
  %v990 = vmul.f32 1.0, %v989
  %vm991 = vcmask 1024
  %992 = vst.msk [vmem:[%s8] sm:$0x3] %vm991, %v990
  // Predicated region
  $region34: #{tpu_custom_call.1} parent=0 // pred_check
    _
  $region35: #{tpu_custom_call.1} parent=0 // pred_check_branch
    %994 = sbr.rel (0) target = $region37
  $region36: #{tpu_custom_call.1} parent=0 // pred_region
    _
  $region37: #{tpu_custom_call.1} parent=0 // pred_fallthru
    _
  // Predicated region
  $region38: #{tpu_custom_call.1} parent=0 // pred_check
    _
  $region39: #{tpu_custom_call.1} parent=0 // pred_check_branch
    %996 = sbr.rel (0) target = $region41
  $region40: #{tpu_custom_call.1} parent=0 // pred_region
    _
  $region41: #{tpu_custom_call.1} parent=0 // pred_fallthru
    _

</llo_original>
